<compile_context>
chip_gen: v6e
topology: v6e:2x2x1
jax: 0.10.0
libtpu: 0.0.40
codegen_flags: <defaults>
</compile_context>

<pallas_src>
import functools

import jax
import jax.numpy as jnp
from jax.experimental import pallas as pl
from jax.experimental.pallas import tpu as pltpu

IGNORE_INDEX = 255


def _ce_kernel(logits_ref, tgt_ref, sum_ref, cnt_ref, loss_acc, cnt_acc,
               *, hw, tile_p, ignore_index):
    """One (batch b, pixel-tile j) grid step.

    logits_ref: (C, TILE_P)  classes on sublanes, pixels on lanes.
    tgt_ref:    (1, TILE_P)  int32 targets.
    sum_ref/cnt_ref: (1, 1, 1) per-batch partial loss-sum / valid-count.
    loss_acc/cnt_acc: (1, TILE_P) f32 lane-wise accumulators (VMEM scratch).
    """
    j = pl.program_id(1)

    @pl.when(j == 0)
    def _():
        loss_acc[...] = jnp.zeros_like(loss_acc)
        cnt_acc[...] = jnp.zeros_like(cnt_acc)

    x = logits_ref[...].astype(jnp.float32)            # (C, TILE_P)
    t = tgt_ref[...]                                   # (1, TILE_P) int32

    # log-softmax denominator: reduce over the class (sublane) axis.
    m = jnp.max(x, axis=0, keepdims=True)              # (1, TILE_P)
    lse = jnp.log(jnp.sum(jnp.exp(x - m), axis=0, keepdims=True)) + m

    # Target-class logit via one-hot select over the class axis (no lane gather).
    cls = jax.lax.broadcasted_iota(jnp.int32, x.shape, 0)        # (C, TILE_P)
    tgt_logit = jnp.sum(jnp.where(cls == t, x, 0.0), axis=0, keepdims=True)

    # Mask ignore_index pixels and out-of-range lanes of the tail tile.
    lane = jax.lax.broadcasted_iota(jnp.int32, t.shape, 1)        # (1, TILE_P)
    in_bounds = (j * tile_p + lane) < hw
    valid = jnp.logical_and(t != ignore_index, in_bounds)

    loss_acc[...] += jnp.where(valid, lse - tgt_logit, 0.0)
    cnt_acc[...] += valid.astype(jnp.float32)

    # Cross-lane reduction + output write only once per batch row.
    @pl.when(j == pl.num_programs(1) - 1)
    def _():
        sum_ref[...] = jnp.sum(loss_acc[...]).reshape(1, 1, 1)
        cnt_ref[...] = jnp.sum(cnt_acc[...]).reshape(1, 1, 1)


@jax.jit
def cross_entropy_loss_2d(inputs, targets):
    """inputs: (N, C, H, W) float logits; targets: (N, H, W) int class ids.

    Returns the scalar mean cross-entropy over pixels with target != 255,
    matching nn.CrossEntropyLoss(ignore_index=255, weight=None).
    """
    N, C, H, W = inputs.shape
    HW = H * W

    # Free reshapes (contiguous NCHW memory): no transpose, no pad in HBM.
    logits = inputs.reshape(N, C, HW)
    tgt = targets.reshape(N, 1, HW).astype(jnp.int32)

    # ~2 MiB of logits per block (double-buffered this stays well under the
    # default scoped VMEM on v5e/v6e/v7x); lane dim multiple of 128 or full HW.
    itemsize = jnp.dtype(inputs.dtype).itemsize
    tile_p = (2 * 1024 * 1024) // (C * itemsize)
    tile_p = max(128, (tile_p // 128) * 128)
    if tile_p >= HW:
        tile_p = HW                      # single full-row tile per batch item
    n_tiles = (HW + tile_p - 1) // tile_p

    kernel = functools.partial(_ce_kernel, hw=HW, tile_p=tile_p,
                               ignore_index=IGNORE_INDEX)

    part_sum, part_cnt = pl.pallas_call(
        kernel,
        out_shape=(
            jax.ShapeDtypeStruct((N, 1, 1), jnp.float32),
            jax.ShapeDtypeStruct((N, 1, 1), jnp.float32),
        ),
        grid_spec=pltpu.PrefetchScalarGridSpec(
            num_scalar_prefetch=0,
            grid=(N, n_tiles),
            in_specs=[
                # (N, C, HW): classes on sublanes, pixels on lanes.
                pl.BlockSpec((None, C, tile_p), lambda b, j: (b, 0, j)),
                # (N, 1, HW): lane-dense int32 targets.
                pl.BlockSpec((None, 1, tile_p), lambda b, j: (b, 0, j)),
            ],
            out_specs=[
                pl.BlockSpec((1, 1, 1), lambda b, j: (b, 0, 0)),
                pl.BlockSpec((1, 1, 1), lambda b, j: (b, 0, 0)),
            ],
            scratch_shapes=[
                pltpu.VMEM((1, tile_p), jnp.float32),
                pltpu.VMEM((1, tile_p), jnp.float32),
            ],
        ),
        compiler_params=pltpu.CompilerParams(
            # batch axis parallel (per-batch output blocks -> megacore on v7x),
            # pixel-tile axis is the per-batch reduction.
            dimension_semantics=("parallel", "arbitrary"),
        ),
    )(logits, tgt)

    # Mean over valid pixels (NaN if no valid pixels, same as PyTorch).
    return (jnp.sum(part_sum) / jnp.sum(part_cnt)).astype(jnp.float32)


def _reference_loss(inputs, targets):
    """Pure-JAX reference for sanity checking."""
    N, C, H, W = inputs.shape
    x = jnp.transpose(inputs, (0, 2, 3, 1)).reshape(-1, C).astype(jnp.float32)
    t = targets.reshape(-1).astype(jnp.int32)
    logp = jax.nn.log_softmax(x, axis=-1)
    safe_t = jnp.where(t == IGNORE_INDEX, 0, t)
    nll = -jnp.take_along_axis(logp, safe_t[:, None], axis=-1)[:, 0]
    valid = (t != IGNORE_INDEX).astype(jnp.float32)
    return jnp.sum(nll * valid) / jnp.sum(valid)


# TODO(synk): optional per-class `weight` vector of the PyTorch module is not
# implemented (module default is weight=None, which this kernel matches).

if __name__ == "__main__":
    key = jax.random.PRNGKey(0)
    k1, k2, k3 = jax.random.split(key, 3)

    N, C, H, W = 2, 4, 16, 16
    inputs = jax.random.normal(k1, (N, C, H, W), dtype=jnp.float32)
    targets = jax.random.randint(k2, (N, H, W), 0, C, dtype=jnp.int32)
    # Sprinkle in some ignore_index pixels.
    ignore_mask = jax.random.bernoulli(k3, 0.1, (N, H, W))
    targets = jnp.where(ignore_mask, IGNORE_INDEX, targets)

    loss = jax.block_until_ready(cross_entropy_loss_2d(inputs, targets))
    ref = jax.block_until_ready(_reference_loss(inputs, targets))
    assert jnp.allclose(loss, ref, rtol=1e-5, atol=1e-5), (loss, ref)

    print("KERNEL_OK")
</pallas_src>

<mosaic_0001>
module attributes {stable_mosaic.version = 11 : i64} {
  func.func @_ce_kernel(%arg0: i32, %arg1: i32, %arg2: memref<1x4x256xf32, #tpu.memory_space<vmem>>, %arg3: memref<1x1x256xi32, #tpu.memory_space<vmem>>, %arg4: memref<1x1x1xf32, #tpu.memory_space<vmem>>, %arg5: memref<1x1x1xf32, #tpu.memory_space<vmem>>, %arg6: memref<1x256xf32, #tpu.memory_space<vmem>>, %arg7: memref<1x256xf32, #tpu.memory_space<vmem>>) attributes {dimension_semantics = [#tpu.dimension_semantics<parallel>, #tpu.dimension_semantics<arbitrary>], iteration_bounds = array<i64: 2, 1>, scalar_prefetch = 0 : i64, scratch_operands = 2 : i64, tpu.core_type = #tpu.core_type<tc>, window_params = [{transform_indices = @transform_0, window_bounds = array<i64: 1, 4, 256>}, {transform_indices = @transform_1, window_bounds = array<i64: 1, 1, 256>}, {transform_indices = @transform_2, window_bounds = array<i64: 1, 1, 1>}, {transform_indices = @transform_3, window_bounds = array<i64: 1, 1, 1>}]} {
    %c0_i32 = arith.constant 0 : i32
    %0 = arith.cmpi eq, %arg1, %c0_i32 : i32
    %1 = arith.extui %0 : i1 to i32
    %c0_i32_0 = arith.constant 0 : i32
    %2 = arith.cmpi ne, %1, %c0_i32_0 : i32
    scf.if %2 {
      %cst_21 = arith.constant 0.000000e+00 : f32
      %46 = vector.broadcast %cst_21 : f32 to vector<1x256xf32>
      %c0_22 = arith.constant 0 : index
      %c0_23 = arith.constant 0 : index
      %47 = vector.load %arg6[%c0_22, %c0_23] : memref<1x256xf32, #tpu.memory_space<vmem>>, vector<1x256xf32>
      tpu.vector_store %arg6[%c0_22, %c0_23], %46 {strides = array<i32>} : memref<1x256xf32, #tpu.memory_space<vmem>>, vector<1x256xf32>,
      %cst_24 = arith.constant 0.000000e+00 : f32
      %48 = vector.broadcast %cst_24 : f32 to vector<1x256xf32>
      %c0_25 = arith.constant 0 : index
      %c0_26 = arith.constant 0 : index
      %49 = vector.load %arg7[%c0_25, %c0_26] : memref<1x256xf32, #tpu.memory_space<vmem>>, vector<1x256xf32>
      tpu.vector_store %arg7[%c0_25, %c0_26], %48 {strides = array<i32>} : memref<1x256xf32, #tpu.memory_space<vmem>>, vector<1x256xf32>,
    } else {
    }
    %c0 = arith.constant 0 : index
    %c0_1 = arith.constant 0 : index
    %c0_2 = arith.constant 0 : index
    %3 = vector.load %arg2[%c0, %c0_1, %c0_2] : memref<1x4x256xf32, #tpu.memory_space<vmem>>, vector<1x4x256xf32>
    %4 = vector.shape_cast %3 : vector<1x4x256xf32> to vector<4x256xf32>
    %c0_3 = arith.constant 0 : index
    %c0_4 = arith.constant 0 : index
    %c0_5 = arith.constant 0 : index
    %5 = vector.load %arg3[%c0_3, %c0_4, %c0_5] : memref<1x1x256xi32, #tpu.memory_space<vmem>>, vector<1x1x256xi32>
    %6 = vector.shape_cast %5 : vector<1x1x256xi32> to vector<1x256xi32>
    %cst = arith.constant dense<0xFF800000> : vector<256xf32>
    %7 = vector.multi_reduction <maximumf>, %4, %cst [0] : vector<4x256xf32> to vector<256xf32>
    %8 = vector.shape_cast %7 : vector<256xf32> to vector<1x256xf32>
    %9 = vector.broadcast %8 : vector<1x256xf32> to vector<4x256xf32>
    %10 = arith.subf %4, %9 : vector<4x256xf32>
    %11 = math.exp %10 : vector<4x256xf32>
    %cst_6 = arith.constant dense<0.000000e+00> : vector<256xf32>
    %12 = vector.multi_reduction <add>, %11, %cst_6 [0] : vector<4x256xf32> to vector<256xf32>
    %13 = vector.shape_cast %12 : vector<256xf32> to vector<1x256xf32>
    %14 = math.log %13 : vector<1x256xf32>
    %15 = arith.addf %14, %8 : vector<1x256xf32>
    %16 = tpu.iota {dimensions = array<i32: 0>} : vector<4x256xi32>
    %17 = vector.broadcast %6 : vector<1x256xi32> to vector<4x256xi32>
    %18 = arith.cmpi eq, %16, %17 : vector<4x256xi32>
    %cst_7 = arith.constant 0.000000e+00 : f32
    %19 = vector.broadcast %cst_7 : f32 to vector<4x256xf32>
    %20 = arith.select %18, %4, %19 : vector<4x256xi1>, vector<4x256xf32>
    %cst_8 = arith.constant dense<0.000000e+00> : vector<256xf32>
    %21 = vector.multi_reduction <add>, %20, %cst_8 [0] : vector<4x256xf32> to vector<256xf32>
    %22 = vector.shape_cast %21 : vector<256xf32> to vector<1x256xf32>
    %23 = tpu.iota {dimensions = array<i32: 1>} : vector<1x256xi32>
    %c256_i32 = arith.constant 256 : i32
    %24 = arith.muli %arg1, %c256_i32 : i32
    %25 = vector.broadcast %24 : i32 to vector<1x256xi32>
    %26 = arith.addi %25, %23 : vector<1x256xi32>
    %c256_i32_9 = arith.constant 256 : i32
    %27 = vector.broadcast %c256_i32_9 : i32 to vector<1x256xi32>
    %28 = arith.cmpi slt, %26, %27 : vector<1x256xi32>
    %c255_i32 = arith.constant 255 : i32
    %29 = vector.broadcast %c255_i32 : i32 to vector<1x256xi32>
    %30 = arith.cmpi ne, %6, %29 : vector<1x256xi32>
    %31 = arith.andi %30, %28 : vector<1x256xi1>
    %c0_10 = arith.constant 0 : index
    %c0_11 = arith.constant 0 : index
    %32 = vector.load %arg6[%c0_10, %c0_11] : memref<1x256xf32, #tpu.memory_space<vmem>>, vector<1x256xf32>
    %33 = arith.subf %15, %22 : vector<1x256xf32>
    %cst_12 = arith.constant 0.000000e+00 : f32
    %34 = vector.broadcast %cst_12 : f32 to vector<1x256xf32>
    %35 = arith.select %31, %33, %34 : vector<1x256xi1>, vector<1x256xf32>
    %36 = arith.addf %32, %35 : vector<1x256xf32>
    %c0_13 = arith.constant 0 : index
    %c0_14 = arith.constant 0 : index
    %37 = vector.load %arg6[%c0_13, %c0_14] : memref<1x256xf32, #tpu.memory_space<vmem>>, vector<1x256xf32>
    tpu.vector_store %arg6[%c0_13, %c0_14], %36 {strides = array<i32>} : memref<1x256xf32, #tpu.memory_space<vmem>>, vector<1x256xf32>,
    %c0_15 = arith.constant 0 : index
    %c0_16 = arith.constant 0 : index
    %38 = vector.load %arg7[%c0_15, %c0_16] : memref<1x256xf32, #tpu.memory_space<vmem>>, vector<1x256xf32>
    %39 = arith.extui %31 : vector<1x256xi1> to vector<1x256xi32>
    %40 = arith.sitofp %39 : vector<1x256xi32> to vector<1x256xf32>
    %41 = arith.addf %38, %40 : vector<1x256xf32>
    %c0_17 = arith.constant 0 : index
    %c0_18 = arith.constant 0 : index
    %42 = vector.load %arg7[%c0_17, %c0_18] : memref<1x256xf32, #tpu.memory_space<vmem>>, vector<1x256xf32>
    tpu.vector_store %arg7[%c0_17, %c0_18], %41 {strides = array<i32>} : memref<1x256xf32, #tpu.memory_space<vmem>>, vector<1x256xf32>,
    %c0_i32_19 = arith.constant 0 : i32
    %43 = arith.cmpi eq, %arg1, %c0_i32_19 : i32
    %44 = arith.extui %43 : i1 to i32
    %c0_i32_20 = arith.constant 0 : i32
    %45 = arith.cmpi ne, %44, %c0_i32_20 : i32
    scf.if %45 {
      %c0_21 = arith.constant 0 : index
      %c0_22 = arith.constant 0 : index
      %46 = vector.load %arg6[%c0_21, %c0_22] : memref<1x256xf32, #tpu.memory_space<vmem>>, vector<1x256xf32>
      %47 = vector.shape_cast %46 : vector<1x256xf32> to vector<1x1x256xf32>
      %cst_23 = arith.constant dense<0.000000e+00> : vector<1xf32>
      %48 = vector.multi_reduction <add>, %47, %cst_23 [1, 2] : vector<1x1x256xf32> to vector<1xf32>
      %49 = vector.shape_cast %48 : vector<1xf32> to vector<1x1x1xf32>
      %50 = vector.extract %49[0, 0, 0] : f32 from vector<1x1x1xf32>
      %51 = vector.broadcast %50 : f32 to vector<1x1x1xf32>
      %c0_24 = arith.constant 0 : index
      %c0_25 = arith.constant 0 : index
      %c0_26 = arith.constant 0 : index
      %52 = vector.load %arg4[%c0_24, %c0_25, %c0_26] : memref<1x1x1xf32, #tpu.memory_space<vmem>>, vector<1x1x1xf32>
      tpu.vector_store %arg4[%c0_24, %c0_25, %c0_26], %51 {strides = array<i32>} : memref<1x1x1xf32, #tpu.memory_space<vmem>>, vector<1x1x1xf32>,
      %c0_27 = arith.constant 0 : index
      %c0_28 = arith.constant 0 : index
      %53 = vector.load %arg7[%c0_27, %c0_28] : memref<1x256xf32, #tpu.memory_space<vmem>>, vector<1x256xf32>
      %54 = vector.shape_cast %53 : vector<1x256xf32> to vector<1x1x256xf32>
      %cst_29 = arith.constant dense<0.000000e+00> : vector<1xf32>
      %55 = vector.multi_reduction <add>, %54, %cst_29 [1, 2] : vector<1x1x256xf32> to vector<1xf32>
      %56 = vector.shape_cast %55 : vector<1xf32> to vector<1x1x1xf32>
      %57 = vector.extract %56[0, 0, 0] : f32 from vector<1x1x1xf32>
      %58 = vector.broadcast %57 : f32 to vector<1x1x1xf32>
      %c0_30 = arith.constant 0 : index
      %c0_31 = arith.constant 0 : index
      %c0_32 = arith.constant 0 : index
      %59 = vector.load %arg5[%c0_30, %c0_31, %c0_32] : memref<1x1x1xf32, #tpu.memory_space<vmem>>, vector<1x1x1xf32>
      tpu.vector_store %arg5[%c0_30, %c0_31, %c0_32], %58 {strides = array<i32>} : memref<1x1x1xf32, #tpu.memory_space<vmem>>, vector<1x1x1xf32>,
    } else {
    }
    return
  }
  func.func @transform_0(%arg0: i32, %arg1: i32) -> (i32, i32, i32) {
    %c0_i32 = arith.constant 0 : i32
    %c0_i32_0 = arith.constant 0 : i32
    return %arg0, %c0_i32, %arg1 : i32, i32, i32
  }
  func.func @transform_1(%arg0: i32, %arg1: i32) -> (i32, i32, i32) {
    %c0_i32 = arith.constant 0 : i32
    %c0_i32_0 = arith.constant 0 : i32
    return %arg0, %c0_i32, %arg1 : i32, i32, i32
  }
  func.func @transform_2(%arg0: i32, %arg1: i32) -> (i32, i32, i32) {
    %c0_i32 = arith.constant 0 : i32
    %c0_i32_0 = arith.constant 0 : i32
    %c0_i32_1 = arith.constant 0 : i32
    return %arg0, %c0_i32, %c0_i32_0 : i32, i32, i32
  }
  func.func @transform_3(%arg0: i32, %arg1: i32) -> (i32, i32, i32) {
    %c0_i32 = arith.constant 0 : i32
    %c0_i32_0 = arith.constant 0 : i32
    %c0_i32_1 = arith.constant 0 : i32
    return %arg0, %c0_i32, %c0_i32_0 : i32, i32, i32
  }
}

</mosaic_0001>

<llo_original>
// kernel: cross_entropy_loss_2d.1
$region0: #{cross_entropy_loss_2d.1}
  #allocation0 [shape = 'u32[]', space=smem, size = 0x4, offset = 0x4, fixed_abs, tag = 'smem constant byte address 0x4 - core index']
  #allocation1 [shape = 'u32[144,128]{1,0:T(1,128)}', space=vmem, size = 0x12000, scoped, tag = 'internal scratch']
  #allocation2 [shape = 'f32[1,256]{1,0:T(1,128)}', space=vmem, size = 0x400, scoped, tag = 'scratch operand']
  #allocation3 [shape = 'f32[1,256]{1,0:T(1,128)}', space=vmem, size = 0x400, scoped, tag = 'scratch operand']
  %s0 = inlined_call_operand.vmem [shape: f32[2,4,256], index: 0, kind: input, shape index: {}]
  %s1 = inlined_call_operand.vmem [shape: s32[2,1,256], index: 1, kind: input, shape index: {}]
  %s2 = inlined_call_operand.vmem [shape: f32[2,1,1], index: 2, kind: output, shape index: {0}]
  %s3 = inlined_call_operand.vmem [shape: f32[2,1,1], index: 3, kind: output, shape index: {1}]
  %4 = xla_tuple %s2, %s3
  %s5 = sld [smem:[#allocation0]]
  $region57: #{cross_entropy_loss_2d.1} parent=0
    _
  %s7 = ssub.s32 1, %s5
  %s8 = scalar_select 0, %s7, %s5
  loop: start=0, step=1, limit=4
  $region2: #{cross_entropy_loss_2d.1} parent=0 // loop_pre_header
    _
  $region3: #{cross_entropy_loss_2d.1} parent=0 // loop_header
    %s10 = sphi 0, %s14
    %p11 = scmp.ge.s32.totalorder %s10, 4
    %s17 = sphi 0, %s29
    %s18 = sphi 0, %s25
    %s19 = sphi 0, %s17
    %s20 = sphi 0, %s18
    %s21 = sphi 0, %s19
    %s22 = sphi 0, %s20
    %s34 = sphi 0, %s36
    %s37 = sphi 0, %s34
    %s38 = sphi 0, %s37
    %s54 = sphi 0, %s38
    %s62 = sphi 0, %s64
    %s65 = sphi 0, %s62
    %s66 = sphi 0, %s65
    %s82 = sphi 0, %s66
    %s88 = sphi 0, %s90
    %s91 = sphi 0, %s88
    %s92 = sphi 0, %s91
    %s108 = sphi 0, %s92
    %s114 = sphi 0, %s116
    %s117 = sphi 0, %s114
    %s118 = sphi 0, %s117
    %s134 = sphi 0, %s118
  $region4: #{cross_entropy_loss_2d.1} parent=0 // loop_header_branch
    %13 = sbr.rel (%p11) target = $region8
  $region5: #{cross_entropy_loss_2d.1} parent=0 // loop_body
    %s15 = ssub.s32 %s10, 1
    %s16 = ssub.s32 %s10, 2
    %s23 = sadd.s32 1, %s18
    %p24 = scmp.ge.s32.totalorder %s23, 1
    %s25 = scalar_select %p24, 0, %s23
    %s26 = sadd.s32 1, %s17
    %s27 = scalar_select %p24, %s26, %s17
    %p28 = scmp.ge.s32.totalorder %s27, 2
    %s29 = scalar_select %p28, 0, %s27
    %s30 = ssub.s32 %s17, %s29
    %s31 = ssub.s32 %s18, %s25
    %s32 = sor.u32 %s30, %s31
    %p33 = scmp.eq.s32.totalorder %s32, 0
    %s35 = sadd.s32 %s34, 1
    %s36 = scalar_select %p33, %s34, %s35
    %p39 = pneg %p33
    %p40 = scmp.eq.s32.totalorder %s10, 1
    %p41 = por %p39, %p40
    %p42 = scmp.ne.s32.totalorder %s34, %s37
    %p43 = scmp.eq.s32.totalorder %s10, 0
    %p44 = por %p42, %p43
    %p45 = scmp.ne.s32.totalorder %s34, %s37
    %p46 = scmp.eq.s32.totalorder %s15, 1
    %p47 = por %p45, %p46
    %p48 = scmp.ne.s32.totalorder %s37, %s38
    %p49 = scmp.eq.s32.totalorder %s15, 0
    %p50 = por %p48, %p49
    %p51 = scmp.ne.s32.totalorder %s37, %s38
    %p52 = scmp.eq.s32.totalorder %s16, 1
    %p53 = por %p51, %p52
    %p55 = scmp.ne.s32.totalorder %s38, %s54
    %p56 = scmp.eq.s32.totalorder %s16, 0
    %p57 = por %p55, %p56
    %s58 = ssub.s32 %s17, %s29
    %s59 = ssub.s32 %s18, %s25
    %s60 = sor.u32 %s58, %s59
    %p61 = scmp.eq.s32.totalorder %s60, 0
    %s63 = sadd.s32 %s62, 1
    %s64 = scalar_select %p61, %s62, %s63
    %p67 = pneg %p61
    %p68 = scmp.eq.s32.totalorder %s10, 1
    %p69 = por %p67, %p68
    %p70 = scmp.ne.s32.totalorder %s62, %s65
    %p71 = scmp.eq.s32.totalorder %s10, 0
    %p72 = por %p70, %p71
    %p73 = scmp.ne.s32.totalorder %s62, %s65
    %p74 = scmp.eq.s32.totalorder %s15, 1
    %p75 = por %p73, %p74
    %p76 = scmp.ne.s32.totalorder %s65, %s66
    %p77 = scmp.eq.s32.totalorder %s15, 0
    %p78 = por %p76, %p77
    %p79 = scmp.ne.s32.totalorder %s65, %s66
    %p80 = scmp.eq.s32.totalorder %s16, 1
    %p81 = por %p79, %p80
    %p83 = scmp.ne.s32.totalorder %s66, %s82
    %p84 = scmp.eq.s32.totalorder %s16, 0
    %p85 = por %p83, %p84
    %s86 = ssub.s32 %s17, %s29
    %p87 = scmp.eq.s32.totalorder %s86, 0
    %s89 = sadd.s32 %s88, 1
    %s90 = scalar_select %p87, %s88, %s89
    %p93 = pneg %p87
    %p94 = scmp.eq.s32.totalorder %s10, 1
    %p95 = por %p93, %p94
    %p96 = scmp.ne.s32.totalorder %s88, %s91
    %p97 = scmp.eq.s32.totalorder %s10, 0
    %p98 = por %p96, %p97
    %p99 = scmp.ne.s32.totalorder %s88, %s91
    %p100 = scmp.eq.s32.totalorder %s15, 1
    %p101 = por %p99, %p100
    %p102 = scmp.ne.s32.totalorder %s91, %s92
    %p103 = scmp.eq.s32.totalorder %s15, 0
    %p104 = por %p102, %p103
    %p105 = scmp.ne.s32.totalorder %s91, %s92
    %p106 = scmp.eq.s32.totalorder %s16, 1
    %p107 = por %p105, %p106
    %p109 = scmp.ne.s32.totalorder %s92, %s108
    %p110 = scmp.eq.s32.totalorder %s16, 0
    %p111 = por %p109, %p110
    %s112 = ssub.s32 %s17, %s29
    %p113 = scmp.eq.s32.totalorder %s112, 0
    %s115 = sadd.s32 %s114, 1
    %s116 = scalar_select %p113, %s114, %s115
    %p119 = pneg %p113
    %p120 = scmp.eq.s32.totalorder %s10, 1
    %p121 = por %p119, %p120
    %p122 = scmp.ne.s32.totalorder %s114, %s117
    %p123 = scmp.eq.s32.totalorder %s10, 0
    %p124 = por %p122, %p123
    %p125 = scmp.ne.s32.totalorder %s114, %s117
    %p126 = scmp.eq.s32.totalorder %s15, 1
    %p127 = por %p125, %p126
    %p128 = scmp.ne.s32.totalorder %s117, %s118
    %p129 = scmp.eq.s32.totalorder %s15, 0
    %p130 = por %p128, %p129
    %p131 = scmp.ne.s32.totalorder %s117, %s118
    %p132 = scmp.eq.s32.totalorder %s16, 1
    %p133 = por %p131, %p132
    %p135 = scmp.ne.s32.totalorder %s118, %s134
    %p136 = scmp.eq.s32.totalorder %s16, 0
    %p137 = por %p135, %p136
    %p138 = scmp.le.s32.totalorder 1, %s10
    %p139 = scmp.lt.s32.totalorder %s10, 3
    %p140 = pnand %p138, %p139
    %p141 = pneg %p140
    // Predicated region
    $region9: #{cross_entropy_loss_2d.1} parent=5 // pred_check
      _
    $region10: #{cross_entropy_loss_2d.1} parent=5 // pred_check_branch
      %143 = sbr.rel (%p140) target = $region12
    $region11: #{cross_entropy_loss_2d.1} parent=5 // pred_region
      %s144 = ssub.s32 %s10, 1
    $region12: #{cross_entropy_loss_2d.1} parent=5 // pred_fallthru
      _
    %p145 = scmp.lt.s32.totalorder %s10, 2
    // Predicated region
    $region13: #{cross_entropy_loss_2d.1} parent=5 // pred_check
      %p146 = pneg %p145
    $region14: #{cross_entropy_loss_2d.1} parent=5 // pred_check_branch
      %148 = sbr.rel (%p146) target = $region16
    $region15: #{cross_entropy_loss_2d.1} parent=5 // pred_region
      // Predicated region
      $region17: #{cross_entropy_loss_2d.1} parent=15 // pred_check
        %p149 = pneg %p44
      $region18: #{cross_entropy_loss_2d.1} parent=15 // pred_check_branch
        %151 = sbr.rel (%p149) target = $region20
      $region19: #{cross_entropy_loss_2d.1} parent=15 // pred_region
        %s152 = smul.u32 2, %s18
        %p153 = scmp.lt.s32.totalorder %s17, 1
        %s154 = scalar_select %p153, %s17, 1
        %p155 = scmp.lt.s32.totalorder %s152, 1
        %s156 = scalar_select %p155, %s152, 1
        %s157 = smul.addr %s154, 2
        %s158 = sadd.s32 %s156, %s157
        %s159 = smul.addr %s158, 4
        %s160 = scalar_lea.vmem %s0, %s159
        %s161 = smul.u32 2, %s18
      $region20: #{cross_entropy_loss_2d.1} parent=15 // pred_fallthru
        _
      // Predicated region
      $region21: #{cross_entropy_loss_2d.1} parent=15 // pred_check
        %p162 = pneg %p72
      $region22: #{cross_entropy_loss_2d.1} parent=15 // pred_check_branch
        %164 = sbr.rel (%p162) target = $region24
      $region23: #{cross_entropy_loss_2d.1} parent=15 // pred_region
        %s165 = smul.u32 2, %s18
        %p166 = scmp.lt.s32.totalorder %s17, 1
        %s167 = scalar_select %p166, %s17, 1
        %p168 = scmp.lt.s32.totalorder %s165, 1
        %s169 = scalar_select %p168, %s165, 1
        %s170 = smul.addr %s167, 2
        %s171 = sadd.s32 %s169, %s170
        %s172 = scalar_lea.vmem %s1, %s171
        %s173 = smul.u32 2, %s18
      $region24: #{cross_entropy_loss_2d.1} parent=15 // pred_fallthru
        _
    $region16: #{cross_entropy_loss_2d.1} parent=5 // pred_fallthru
      _
    %p174 = scmp.le.s32.totalorder 1, %s10
    %p175 = scmp.lt.s32.totalorder %s10, 3
    %p176 = pnand %p174, %p175
    %p177 = pneg %p176
    // Predicated region
    $region25: #{cross_entropy_loss_2d.1} parent=5 // pred_check
      _
    $region26: #{cross_entropy_loss_2d.1} parent=5 // pred_check_branch
      %179 = sbr.rel (%p176) target = $region28
    $region27: #{cross_entropy_loss_2d.1} parent=5 // pred_region
      %s180 = ssub.s32 %s10, 1
      %s181 = smul.u32 2, %s20
      %p182 = scmp.lt.s32.totalorder %s19, 1
      %s183 = scalar_select %p182, %s19, 1
      %p184 = scmp.lt.s32.totalorder %s181, 1
      %s185 = scalar_select %p184, %s181, 1
      %s186 = smul.addr %s183, 2
      %s187 = sadd.s32 %s185, %s186
      %s188 = smul.addr %s187, 4
      %s189 = scalar_lea.vmem %s0, %s188
      %p190 = pneg %p50
      %p191 = pneg %p47
      %s192 = smul.u32 2, %s20
      %p193 = scmp.lt.s32.totalorder %s19, 1
      %s194 = scalar_select %p193, %s19, 1
      %p195 = scmp.lt.s32.totalorder %s192, 1
      %s196 = scalar_select %p195, %s192, 1
      %s197 = smul.addr %s194, 2
      %s198 = sadd.s32 %s196, %s197
      %s199 = scalar_lea.vmem %s1, %s198
      %p200 = pneg %p78
      %p201 = pneg %p75
      %p202 = pneg %p104
      %p203 = pneg %p101
      %p204 = scmp.lt.s32.totalorder %s19, 1
      %s205 = scalar_select %p204, %s19, 1
      %s206 = scalar_lea.vmem %s2, %s205
      %p207 = pneg %p130
      %p208 = pneg %p127
      %p209 = scmp.lt.s32.totalorder %s19, 1
      %s210 = scalar_select %p209, %s19, 1
      %s211 = scalar_lea.vmem %s3, %s210
      %s212 = smul.u32 2, %s20
      %p213 = scmp.lt.s32.totalorder %s19, 1
      %s214 = scalar_select %p213, %s19, 1
      %p215 = scmp.lt.s32.totalorder %s212, 1
      %s216 = scalar_select %p215, %s212, 1
      %s217 = smul.addr %s214, 2
      %s218 = sadd.s32 %s216, %s217
      %s219 = smul.addr %s218, 4
      %s220 = scalar_lea.vmem %s0, %s219
      %s221 = smul.u32 2, %s20
      %s222 = smul.u32 2, %s20
      %p223 = scmp.lt.s32.totalorder %s19, 1
      %s224 = scalar_select %p223, %s19, 1
      %p225 = scmp.lt.s32.totalorder %s222, 1
      %s226 = scalar_select %p225, %s222, 1
      %s227 = smul.addr %s224, 2
      %s228 = sadd.s32 %s226, %s227
      %s229 = scalar_lea.vmem %s1, %s228
      %s230 = smul.u32 2, %s20
      %p231 = scmp.lt.s32.totalorder %s19, 1
      %s232 = scalar_select %p231, %s19, 1
      %s233 = scalar_lea.vmem %s2, %s232
      %p234 = scmp.lt.s32.totalorder %s19, 1
      %s235 = scalar_select %p234, %s19, 1
      %s236 = scalar_lea.vmem %s3, %s235
      %p237 = scmp.eq.s32.totalorder %s20, 0
      // Predicated region
      $region29: #{cross_entropy_loss_2d.1} parent=27 // pred_check
        %p238 = pneg %p237
      $region30: #{cross_entropy_loss_2d.1} parent=27 // pred_check_branch
        %240 = sbr.rel (%p238) target = $region32
      $region31: #{cross_entropy_loss_2d.1} parent=27 // pred_region
        %v241 = vlaneseq
        %vm242 = vcmp.ge.s32.totalorder %v241, 0
        %vm243 = vcmp.lt.s32.totalorder %v241, 256
        %vm244 = vmand %vm242, %vm243
        %245 = vst.msk [vmem:[#allocation2] sm:$0x3] %vm244, 0.0
        %246 = vst.msk [vmem:[#allocation3] sm:$0x3] %vm244, 0.0
      $region32: #{cross_entropy_loss_2d.1} parent=27 // pred_fallthru
        _
      %v247 = vld [vmem:[%s220] sm:$0xff]
      %v248 = vld [vmem:[%s229] sm:$0x3]
      %v250 = vcombine.high %v247, %v247
      %vm252 = vcmask 1043456
      %v253 = vsel %vm252, %v247, -inf
      %v254 = vrot.slane %v253, 4
      %v255 = vmax.f32 %v253, %v254
      %v256 = vrot.slane %v255, 2
      %v257 = vmax.f32 %v255, %v256
      %v258 = vrot.slane %v257, 1
      %v259 = vmax.f32 %v257, %v258
      %v260 = vsel %vm252, %v250, -inf
      %v261 = vrot.slane %v260, 4
      %v262 = vmax.f32 %v260, %v261
      %v263 = vrot.slane %v262, 2
      %v264 = vmax.f32 %v262, %v263
      %v265 = vrot.slane %v264, 1
      %v266 = vmax.f32 %v264, %v265
      %v269 = vcombine.low %v259, %v266
      %v271 = vsub.f32 %v247, %v269
      %v272 = vmul.f32 %v271, 1.442695
      %v273 = vpow.pop %v272
      %v275 = vcombine.high %v273, %v273
      %v277 = vsel %vm252, %v273, 0.0
      %v278 = vrot.slane %v277, 4
      %v279 = vadd.f32 %v277, %v278
      %v280 = vrot.slane %v279, 2
      %v281 = vadd.f32 %v279, %v280
      %v282 = vrot.slane %v281, 1
      %v283 = vadd.f32 %v281, %v282
      %v284 = vsel %vm252, %v275, 0.0
      %v285 = vrot.slane %v284, 4
      %v286 = vadd.f32 %v284, %v285
      %v287 = vrot.slane %v286, 2
      %v288 = vadd.f32 %v286, %v287
      %v289 = vrot.slane %v288, 1
      %v290 = vadd.f32 %v288, %v289
      %v291 = vlog2.pop %v283
      %v292 = vmul.f32 %v291, 0.6931472
      %v293 = vlog2.pop %v290
      %v294 = vmul.f32 %v293, 0.6931472
      %v295 = vadd.f32 %v292, %v259
      %v296 = vadd.f32 %v294, %v266
      %v297 = vlaneseq
      %v298 = vshrl.u32 %v297, 7
      %v299 = vlaneseq
      %v300 = vshrl.u32 %v299, 7
      %v301 = vsub.s32 0, %v300
      %v302 = vrot.slane %v248, %v301
      %v303 = vlaneseq
      %v304 = vshrl.u32 %v303, 7
      %v305 = vsub.s32 1, %v304
      %v306 = vrot.slane %v248, %v305
      %vm307 = vcmp.eq.s32.totalorder %v298, %v302
      %vm308 = vcmp.eq.s32.totalorder %v298, %v306
      %v309 = vsel %vm307, %v247, 0.0
      %v310 = vsel %vm308, %v250, 0.0
      %v311 = vsel %vm252, %v309, 0.0
      %v312 = vrot.slane %v311, 4
      %v313 = vadd.f32 %v311, %v312
      %v314 = vrot.slane %v313, 2
      %v315 = vadd.f32 %v313, %v314
      %v316 = vrot.slane %v315, 1
      %v317 = vadd.f32 %v315, %v316
      %v318 = vsel %vm252, %v310, 0.0
      %v319 = vrot.slane %v318, 4
      %v320 = vadd.f32 %v318, %v319
      %v321 = vrot.slane %v320, 2
      %v322 = vadd.f32 %v320, %v321
      %v323 = vrot.slane %v322, 1
      %v324 = vadd.f32 %v322, %v323
      %v325 = vlaneseq
      %v326 = vand.u32 %v325, 127
      %v327 = vadd.s32 %v326, 128
      %s328 = smul.u32 %s20, 256
      %v329 = vstv %s328
      %v330 = vadd.s32 %v329, %v326
      %v331 = vadd.s32 %v329, %v327
      %vm332 = vcmp.lt.s32.totalorder %v330, 256
      %vm333 = vcmp.lt.s32.totalorder %v331, 256
      %vm334 = vcmp.ne.s32.totalorder %v248, 255
      %v335 = vsel %vm332, 1, 0
      %v336 = vsel %vm333, 1, 0
      %v337 = vcombine.low %v335, %v336
      %v339 = vunpack.c.l.s4 1966171168
      %v340 = vunpack.c.0.s8 %v339
      %v341 = vlaneseq
      %v342 = vshrl.u32 %v341, 7
      %v343 = vsub.s32 %v340, %v342
      %v344 = vrot.slane %v337, %v343
      %v346 = vunpack.c.l.s4 1966171168
      %v347 = vunpack.c.0.s8 %v346
      %v348 = vlaneseq
      %v349 = vshrl.u32 %v348, 7
      %v350 = vsub.s32 %v347, %v349
      %v351 = vrot.slane %v344, %v350
      %vm352 = vcmp.ne.s32.totalorder %v351, 0
      %vm353 = vmand %vm334, %vm352
      %v354 = vld [vmem:[#allocation2] sm:$0x3]
      %v355 = vsub.f32 %v295, %v317
      %v356 = vsub.f32 %v296, %v324
      %v359 = vcombine.low %v355, %v356
      %v361 = vunpack.c.l.s4 1966171168
      %v362 = vunpack.c.0.s8 %v361
      %v363 = vlaneseq
      %v364 = vshrl.u32 %v363, 7
      %v365 = vsub.s32 %v362, %v364
      %v366 = vrot.slane %v359, %v365
      %v368 = vunpack.c.l.s4 1966171168
      %v369 = vunpack.c.0.s8 %v368
      %v370 = vlaneseq
      %v371 = vshrl.u32 %v370, 7
      %v372 = vsub.s32 %v369, %v371
      %v373 = vrot.slane %v366, %v372
      %v375 = vsel %vm353, %v373, 0.0
      %v376 = vadd.f32 %v354, %v375
      %v377 = vlaneseq
      %vm378 = vcmp.ge.s32.totalorder %v377, 0
      %vm379 = vcmp.lt.s32.totalorder %v377, 256
      %vm380 = vmand %vm378, %vm379
      %381 = vst.msk [vmem:[#allocation2] sm:$0x3] %vm380, %v376
      %v382 = vld [vmem:[#allocation3] sm:$0x3]
      %v383 = vsel %vm353, 1, 0
      %v384 = vcvt.s32.f32 %v383
      %v385 = vadd.f32 %v382, %v384
      %386 = vst.msk [vmem:[#allocation3] sm:$0x3] %vm380, %v385
      // Predicated region
      $region33: #{cross_entropy_loss_2d.1} parent=27 // pred_check
        %p387 = pneg %p237
      $region34: #{cross_entropy_loss_2d.1} parent=27 // pred_check_branch
        %389 = sbr.rel (%p387) target = $region36
      $region35: #{cross_entropy_loss_2d.1} parent=27 // pred_region
        %v390 = vld [vmem:[#allocation2] sm:$0x3]
        %v392 = vlaneseq
        %v393 = vshrl.u32 %v392, 7
        %v394 = vsub.s32 0, %v393
        %v395 = vrot.slane %v390, %v394
        %v396 = vlaneseq
        %v397 = vshrl.u32 %v396, 7
        %v398 = vsub.s32 1, %v397
        %v399 = vrot.slane %v390, %v398
        %vm402 = vcmask 1040384
        %v403 = vsel %vm402, %v395, 0.0
        %v404 = vsel %vm402, %v399, 0.0
        %v405 = vadd.f32 %v403, %v404
        %406 = vadd.xlane.f32.xlu0 %v405
        %v407 = vpop.xlane.xlu0 %406
        %v408 = vrot.slane %v407, 4
        %v409 = vadd.f32 %v407, %v408
        %v410 = vrot.slane %v409, 2
        %v411 = vadd.f32 %v409, %v410
        %v412 = vrot.slane %v411, 1
        %v413 = vadd.f32 %v411, %v412
        %s414 = vtos %v413
        %v415 = vstv %s414
        %vm416 = vcmask 0
        %417 = vst.msk [vmem:[%s233] sm:$0x1] %vm416, %v415
        %v418 = vld [vmem:[#allocation3] sm:$0x3]
        %v420 = vlaneseq
        %v421 = vshrl.u32 %v420, 7
        %v422 = vsub.s32 0, %v421
        %v423 = vrot.slane %v418, %v422
        %v424 = vlaneseq
        %v425 = vshrl.u32 %v424, 7
        %v426 = vsub.s32 1, %v425
        %v427 = vrot.slane %v418, %v426
        %v430 = vsel %vm402, %v423, 0.0
        %v431 = vsel %vm402, %v427, 0.0
        %v432 = vadd.f32 %v430, %v431
        %433 = vadd.xlane.f32.xlu0 %v432
        %v434 = vpop.xlane.xlu0 %433
        %v435 = vrot.slane %v434, 4
        %v436 = vadd.f32 %v434, %v435
        %v437 = vrot.slane %v436, 2
        %v438 = vadd.f32 %v436, %v437
        %v439 = vrot.slane %v438, 1
        %v440 = vadd.f32 %v438, %v439
        %s441 = vtos %v440
        %v442 = vstv %s441
        %443 = vst.msk [vmem:[%s236] sm:$0x1] %vm416, %v442
      $region36: #{cross_entropy_loss_2d.1} parent=27 // pred_fallthru
        _
      %p444 = scmp.lt.s32.totalorder %s19, 1
      %s445 = scalar_select %p444, %s19, 1
      %s446 = scalar_lea.vmem %s2, %s445
      %p447 = scmp.lt.s32.totalorder %s19, 1
      %s448 = scalar_select %p447, %s19, 1
      %s449 = scalar_lea.vmem %s3, %s448
      // Predicated region
      $region37: #{cross_entropy_loss_2d.1} parent=27 // pred_check
        %p450 = pneg %p101
      $region38: #{cross_entropy_loss_2d.1} parent=27 // pred_check_branch
        %452 = sbr.rel (%p450) target = $region40
      $region39: #{cross_entropy_loss_2d.1} parent=27 // pred_region
        _
      $region40: #{cross_entropy_loss_2d.1} parent=27 // pred_fallthru
        _
      // Predicated region
      $region41: #{cross_entropy_loss_2d.1} parent=27 // pred_check
        %p453 = pneg %p127
      $region42: #{cross_entropy_loss_2d.1} parent=27 // pred_check_branch
        %455 = sbr.rel (%p453) target = $region44
      $region43: #{cross_entropy_loss_2d.1} parent=27 // pred_region
        _
      $region44: #{cross_entropy_loss_2d.1} parent=27 // pred_fallthru
        _
    $region28: #{cross_entropy_loss_2d.1} parent=5 // pred_fallthru
      _
    %p456 = scmp.le.s32.totalorder 2, %s10
    // Predicated region
    $region45: #{cross_entropy_loss_2d.1} parent=5 // pred_check
      %p457 = pneg %p456
    $region46: #{cross_entropy_loss_2d.1} parent=5 // pred_check_branch
      %459 = sbr.rel (%p457) target = $region48
    $region47: #{cross_entropy_loss_2d.1} parent=5 // pred_region
      %s460 = ssub.s32 %s10, 2
      // Predicated region
      $region49: #{cross_entropy_loss_2d.1} parent=47 // pred_check
        %p461 = pneg %p107
      $region50: #{cross_entropy_loss_2d.1} parent=47 // pred_check_branch
        %463 = sbr.rel (%p461) target = $region52
      $region51: #{cross_entropy_loss_2d.1} parent=47 // pred_region
        %p464 = scmp.lt.s32.totalorder %s21, 1
        %s465 = scalar_select %p464, %s21, 1
        %s466 = scalar_lea.vmem %s2, %s465
      $region52: #{cross_entropy_loss_2d.1} parent=47 // pred_fallthru
        _
      // Predicated region
      $region53: #{cross_entropy_loss_2d.1} parent=47 // pred_check
        %p467 = pneg %p133
      $region54: #{cross_entropy_loss_2d.1} parent=47 // pred_check_branch
        %469 = sbr.rel (%p467) target = $region56
      $region55: #{cross_entropy_loss_2d.1} parent=47 // pred_region
        %p470 = scmp.lt.s32.totalorder %s21, 1
        %s471 = scalar_select %p470, %s21, 1
        %s472 = scalar_lea.vmem %s3, %s471
      $region56: #{cross_entropy_loss_2d.1} parent=47 // pred_fallthru
        _
    $region48: #{cross_entropy_loss_2d.1} parent=5 // pred_fallthru
      _
  $region6: #{cross_entropy_loss_2d.1} parent=0 // loop_footer
    %s14 = sadd.s32 1, %s10
  $region7: #{cross_entropy_loss_2d.1} parent=0 // loop_footer_branch
    %9 = sbr.rel target = $region3
  $region8: #{cross_entropy_loss_2d.1} parent=0 // loop_exit
    _

</llo_original>
